<compile_context>
chip_gen: v7x
topology: tpu7x:2x2x1
jax: 0.10.0
libtpu: 0.0.40
codegen_flags: <defaults>
</compile_context>

<pallas_src>
import jax
import jax.numpy as jnp
from jax.experimental import pallas as pl
from jax.experimental.pallas import tpu as pltpu

H = 768          # BERT hidden size
C = 2            # number of classes
C_PAD = 128      # lane-padded class dim (TPU lane width)
NEG = -1e30      # bias value for padded classes -> exp() == 0 in softmax


def cls_head_kernel(x_ref, w_ref, b_ref, o_ref):
    """x: [bb, H] f32 (CLS features), w: [H, C_PAD] (bf16 or f32),
    b: [1, C_PAD] f32, o: [bb, C_PAD] f32.

    Computes softmax(x @ w + b, axis=-1).  Padded classes carry a bias of NEG
    so they contribute exp(...) == 0 to the softmax denominator, making the
    result identical to a softmax over the 2 real classes.  Matmul accumulates
    in f32; bias add and softmax are done in f32.
    """
    x = x_ref[...].astype(w_ref.dtype)                       # no-op if w is f32
    logits = jnp.dot(x, w_ref[...],
                     preferred_element_type=jnp.float32) + b_ref[...]
    logits = logits - jnp.max(logits, axis=-1, keepdims=True)
    e = jnp.exp(logits)
    denom = jnp.sum(e, axis=-1, keepdims=True)
    o_ref[...] = (e * pl.reciprocal(denom, approx=True)).astype(o_ref.dtype)


def make_cls_head_params(fc_weight, fc_bias, compute_dtype=jnp.bfloat16):
    """Build the lane-padded weight/bias tiles ONCE (at model-load time).

    fc_weight : [C, H] (PyTorch Linear layout)   fc_bias : [C]
    Returns w_pad [H, C_PAD] in compute_dtype and b_pad [1, C_PAD] in f32.
    """
    w_pad = jnp.zeros((H, C_PAD), compute_dtype).at[:, :C].set(
        fc_weight.T.astype(compute_dtype))
    b_pad = jnp.full((1, C_PAD), NEG, jnp.float32).at[0, :C].set(
        fc_bias.astype(jnp.float32))
    return w_pad, b_pad


def bert_classifier_head(last_hidden_state, w_pad, b_pad, *, block_b=256):
    """Pallas implementation of Model.forward's own compute.

    last_hidden_state : [B, S, H] float32 (stand-in for pretrained BERT output)
    w_pad, b_pad      : precomputed padded parameters (make_cls_head_params)
    returns           : [B, C]    float32 softmax probabilities
    """
    B, S, Hdim = last_hidden_state.shape
    bb = min(block_b, B)                       # either full B or a multiple of 8
    grid = (pl.cdiv(B, bb),)

    # Zero-copy view: [B, S, H] -> [B, S*H].  The x BlockSpec then reads only
    # columns [0:H) of each row, i.e. exactly the [CLS] token features, so the
    # DMA never touches the other S-1 tokens.
    hs2 = last_hidden_state.reshape(B, S * Hdim)

    out_pad = pl.pallas_call(
        cls_head_kernel,
        out_shape=jax.ShapeDtypeStruct((B, C_PAD), jnp.float32),
        grid=grid,
        in_specs=[
            pl.BlockSpec((bb, Hdim), lambda i: (i, 0)),      # CLS rows only
            pl.BlockSpec((Hdim, C_PAD), lambda i: (0, 0)),   # weight, resident
            pl.BlockSpec((1, C_PAD), lambda i: (0, 0)),      # bias, resident
        ],
        out_specs=pl.BlockSpec((bb, C_PAD), lambda i: (i, 0)),
        compiler_params=pltpu.CompilerParams(
            dimension_semantics=("parallel",)),
    )(hs2, w_pad, b_pad)

    return out_pad[:, :C]                                    # [B, C]


def synthetic_pretrained_stub(input_ids, attention_mask, token_type_ids, key):
    """Deterministic stand-in for BertModel('bert-base-chinese').

    # TODO(synk): the real pretrained BERT encoder (12-layer transformer with
    # checkpoint weights) is not translatable in-script; replaced with a
    # deterministic embedding-table lookup producing last_hidden_state [B,S,H].
    """
    vocab = 128
    emb = jax.random.normal(key, (vocab, H), jnp.float32) * 0.02
    hidden = emb[input_ids]                                  # [B, S, H]
    hidden = hidden * attention_mask[..., None].astype(jnp.float32)
    hidden = hidden + token_type_ids[..., None].astype(jnp.float32) * 0.0
    return hidden


if __name__ == "__main__":
    key = jax.random.PRNGKey(0)
    k_ids, k_emb, k_w, k_b = jax.random.split(key, 4)

    B, S = 2, 8
    input_ids = jax.random.randint(k_ids, (B, S), 0, 128, dtype=jnp.int32)
    attention_mask = jnp.ones((B, S), jnp.int32)
    token_type_ids = jnp.zeros((B, S), jnp.int32)

    # "pretrained" forward (synthetic)
    last_hidden_state = synthetic_pretrained_stub(
        input_ids, attention_mask, token_type_ids, k_emb)

    # Deterministic init of the module's own parameters: fc = Linear(768, 2)
    fc_weight = jax.random.normal(k_w, (C, H), jnp.float32) * 0.02   # [2, 768]
    fc_bias = jax.random.normal(k_b, (C,), jnp.float32) * 0.02       # [2]

    # Hoisted parameter prep: done once, not per forward call.
    w_pad, b_pad = make_cls_head_params(fc_weight, fc_bias,
                                        compute_dtype=jnp.bfloat16)

    fwd = jax.jit(bert_classifier_head)
    out = fwd(last_hidden_state, w_pad, b_pad)
    out = jax.block_until_ready(out)

    # Reference check (plain JAX, full f32).  Tolerance accounts for the bf16
    # weight path and the approx (EUP) reciprocal in the kernel.
    ref = jax.nn.softmax(last_hidden_state[:, 0, :] @ fc_weight.T + fc_bias,
                         axis=1)
    assert out.shape == (B, C)
    assert jnp.allclose(out, ref, atol=2e-3, rtol=0)
    assert jnp.allclose(jnp.sum(out, axis=1), 1.0, atol=2e-3)

    print("KERNEL_OK")
</pallas_src>

<mosaic_0001>
module attributes {stable_mosaic.version = 11 : i64} {
  func.func @cls_head_kernel(%arg0: i32, %arg1: memref<2x768xf32, #tpu.memory_space<vmem>>, %arg2: memref<768x128xbf16, #tpu.memory_space<vmem>>, %arg3: memref<1x128xf32, #tpu.memory_space<vmem>>, %arg4: memref<2x128xf32, #tpu.memory_space<vmem>>) attributes {dimension_semantics = [#tpu.dimension_semantics<parallel>], iteration_bounds = array<i64: 1>, scalar_prefetch = 0 : i64, scratch_operands = 0 : i64, tpu.core_type = #tpu.core_type<tc>, window_params = [{transform_indices = @transform_0, window_bounds = array<i64: 2, 768>}, {pipeline_mode = #tpu.pipeline_mode<synchronous>, transform_indices = @transform_1, window_bounds = array<i64: 768, 128>}, {pipeline_mode = #tpu.pipeline_mode<synchronous>, transform_indices = @transform_2, window_bounds = array<i64: 1, 128>}, {transform_indices = @transform_3, window_bounds = array<i64: 2, 128>}]} {
    %c0 = arith.constant 0 : index
    %c0_0 = arith.constant 0 : index
    %0 = vector.load %arg1[%c0, %c0_0] : memref<2x768xf32, #tpu.memory_space<vmem>>, vector<2x768xf32>
    %1 = arith.truncf %0 : vector<2x768xf32> to vector<2x768xbf16>
    %c0_1 = arith.constant 0 : index
    %c0_2 = arith.constant 0 : index
    %2 = vector.load %arg2[%c0_1, %c0_2] : memref<768x128xbf16, #tpu.memory_space<vmem>>, vector<768x128xbf16>
    %cst = arith.constant dense<0.000000e+00> : vector<2x128xf32>
    %3 = tpu.matmul %1, %2, %cst {dimension_numbers = #tpu.dot_dimension_numbers<[1], [0], [0], [1], [0, 0, 1, 1], [], []>} : vector<2x768xbf16>, vector<768x128xbf16>, vector<2x128xf32> -> vector<2x128xf32>
    %c0_3 = arith.constant 0 : index
    %c0_4 = arith.constant 0 : index
    %4 = vector.load %arg3[%c0_3, %c0_4] : memref<1x128xf32, #tpu.memory_space<vmem>>, vector<1x128xf32>
    %5 = vector.broadcast %4 : vector<1x128xf32> to vector<2x128xf32>
    %6 = arith.addf %3, %5 : vector<2x128xf32>
    %cst_5 = arith.constant dense<0xFF800000> : vector<2xf32>
    %7 = vector.multi_reduction <maximumf>, %6, %cst_5 [1] : vector<2x128xf32> to vector<2xf32>
    %8 = vector.shape_cast %7 : vector<2xf32> to vector<2x1xf32>
    %9 = vector.broadcast %8 : vector<2x1xf32> to vector<2x128xf32>
    %10 = arith.subf %6, %9 : vector<2x128xf32>
    %11 = math.exp %10 : vector<2x128xf32>
    %cst_6 = arith.constant dense<0.000000e+00> : vector<2xf32>
    %12 = vector.multi_reduction <add>, %11, %cst_6 [1] : vector<2x128xf32> to vector<2xf32>
    %13 = vector.shape_cast %12 : vector<2xf32> to vector<2x1xf32>
    %14 = tpu.reciprocal %13 {approx = true} : vector<2x1xf32> -> vector<2x1xf32>
    %15 = vector.broadcast %14 : vector<2x1xf32> to vector<2x128xf32>
    %16 = arith.mulf %11, %15 : vector<2x128xf32>
    %c0_7 = arith.constant 0 : index
    %c0_8 = arith.constant 0 : index
    %17 = vector.load %arg4[%c0_7, %c0_8] : memref<2x128xf32, #tpu.memory_space<vmem>>, vector<2x128xf32>
    tpu.vector_store %arg4[%c0_7, %c0_8], %16 {strides = array<i32>} : memref<2x128xf32, #tpu.memory_space<vmem>>, vector<2x128xf32>,
    return
  }
  func.func @transform_0(%arg0: i32) -> (i32, i32) {
    %c0_i32 = arith.constant 0 : i32
    %c0_i32_0 = arith.constant 0 : i32
    return %arg0, %c0_i32 : i32, i32
  }
  func.func @transform_1(%arg0: i32) -> (i32, i32) {
    %c0_i32 = arith.constant 0 : i32
    %c0_i32_0 = arith.constant 0 : i32
    %c0_i32_1 = arith.constant 0 : i32
    return %c0_i32, %c0_i32_0 : i32, i32
  }
  func.func @transform_2(%arg0: i32) -> (i32, i32) {
    %c0_i32 = arith.constant 0 : i32
    %c0_i32_0 = arith.constant 0 : i32
    %c0_i32_1 = arith.constant 0 : i32
    return %c0_i32, %c0_i32_0 : i32, i32
  }
  func.func @transform_3(%arg0: i32) -> (i32, i32) {
    %c0_i32 = arith.constant 0 : i32
    %c0_i32_0 = arith.constant 0 : i32
    return %arg0, %c0_i32 : i32, i32
  }
}

</mosaic_0001>

<llo_original>
// kernel: bert_classifier_head.1
$region0: #{bert_classifier_head.1}
  #allocation0 [shape = 'u32[]', space=smem, size = 0x4, offset = 0x4, fixed_abs, tag = 'smem constant byte address 0x4 - core index']
  #allocation1 [shape = 'u32[144,128]{1,0:T(1,128)}', space=vmem, size = 0x12000, scoped, tag = 'internal scratch']
  %s0 = inlined_call_operand.vmem [shape: f32[2,6144], index: 0, kind: input, shape index: {}]
  %s1 = inlined_call_operand.hbm [shape: bf16[768,128], index: 1, kind: input, shape index: {}]
  %s2 = inlined_call_operand.vmem [shape: f32[1,128], index: 2, kind: input, shape index: {}]
  %s3 = inlined_call_operand.hbm [shape: f32[2,128], index: 3, kind: output, shape index: {}]
  %s4 = sld [smem:[#allocation0]]
  $region26: #{bert_classifier_head.1} parent=0
    _
  %s6 = ssub.s32 1, %s4
  %s7 = scalar_select 0, %s6, %s4
  $region1: #{bert_classifier_head.1} parent=0
    #allocation2 [shape = 'u8[196608]{0}', space=vmem, size = 0x30000, scoped, tag = 'input window, operand 1, single buffered']
    #allocation3 [shape = 's32[1]{0}', space=sflag, size = 0x4, scoped, tag = 'scoped memory for bert_classifier_head.1']
    #allocation4 [shape = 's32[1]{0}', space=sflag, size = 0x4, scoped, tag = 'scoped memory for bert_classifier_head.1']
    #allocation5 [shape = 'u8[1024]{0}', space=vmem, size = 0x400, scoped, tag = 'output window, operand 0, single buffered']
    %8 = vsyncpa [#allocation3], 0
    %9 = vsyncpa [#allocation4], 0
    // Predicated region
    $region2: #{bert_classifier_head.1} parent=1 // pred_check
      _
    $region3: #{bert_classifier_head.1} parent=1 // pred_check_branch
      %11 = sbr.rel (0) target = $region5
    $region4: #{bert_classifier_head.1} parent=1 // pred_region
      _
    $region5: #{bert_classifier_head.1} parent=1 // pred_fallthru
      _
    // Predicated region
    $region6: #{bert_classifier_head.1} parent=1 // pred_check
      _
    $region7: #{bert_classifier_head.1} parent=1 // pred_check_branch
      %13 = sbr.rel (0) target = $region9
    $region8: #{bert_classifier_head.1} parent=1 // pred_region
      %s15 = ssub.s32 6144, 6144
      %16 = vsyncadd [#allocation3], %s15
      %s17 = sshll.u32 [#allocation2], 4
      %s18 = int_to_ptr.vmem [resolvable:$true] %s17
      %23 = dma.hbm_to_vmem [thread:$0]  %s1, 6144, %s18, [#allocation3], 64, 64, 4
    $region9: #{bert_classifier_head.1} parent=1 // pred_fallthru
      _
    // Predicated region
    $region10: #{bert_classifier_head.1} parent=1 // pred_check
      _
    $region11: #{bert_classifier_head.1} parent=1 // pred_check_branch
      %25 = sbr.rel (0) target = $region13
    $region12: #{bert_classifier_head.1} parent=1 // pred_region
      _
    $region13: #{bert_classifier_head.1} parent=1 // pred_fallthru
      _
    // Predicated region
    $region14: #{bert_classifier_head.1} parent=1 // pred_check
      _
    $region15: #{bert_classifier_head.1} parent=1 // pred_check_branch
      %27 = sbr.rel (0) target = $region17
    $region16: #{bert_classifier_head.1} parent=1 // pred_region
      %28 = dma.done [#allocation3], 6144
    $region17: #{bert_classifier_head.1} parent=1 // pred_fallthru
      _
    %v30 = vld [vmem:[%s0] sm:$0xff]
    %v31 = vld [vmem:[%s0 + $0x8] sm:$0xf]
    %v34 = vcombine.high %v30, %v30
    %v36 = vunpack.c.l.s4 1983009808
    %v37 = vunpack.c.0.s8 %v36
    %v38 = vlaneseq
    %v39 = vshrl.u32 %v38, 7
    %v40 = vsub.s32 %v37, %v39
    %v41 = vrot.slane %v30, %v40
    %v43 = vunpack.c.l.s4 1983009808
    %v44 = vunpack.c.0.s8 %v43
    %v45 = vlaneseq
    %v46 = vshrl.u32 %v45, 7
    %v47 = vsub.s32 %v44, %v46
    %v48 = vrot.slane %v34, %v47
    %v49 = vcombine.high %v41, %v41
    %v50 = vcombine.high %v48, %v48
    %v52 = vunpack.c.l.s4 1983009808
    %v53 = vunpack.c.0.s8 %v52
    %v54 = vlaneseq
    %v55 = vshrl.u32 %v54, 7
    %v56 = vsub.s32 %v53, %v55
    %v57 = vrot.slane %v31, %v56
    %v58 = vcombine.high %v57, %v57
    %v65 = vpack.c.bf16 %v41, %v41
    %v66 = vpack.c.bf16 %v49, %v49
    %v67 = vpack.c.bf16 %v48, %v48
    %v68 = vpack.c.bf16 %v50, %v50
    %v69 = vpack.c.bf16 %v57, %v57
    %v70 = vpack.c.bf16 %v58, %v58
    %v71 = vld [vmem:[#allocation2] sm:$0xf]
    %v72 = vld [vmem:[#allocation2 + $0x4] sm:$0xf]
    %v73 = vld [vmem:[#allocation2 + $0x8] sm:$0xf]
    %v74 = vld [vmem:[#allocation2 + $0xc] sm:$0xf]
    %v75 = vld [vmem:[#allocation2 + $0x10] sm:$0xf]
    %v76 = vld [vmem:[#allocation2 + $0x14] sm:$0xf]
    %v77 = vld [vmem:[#allocation2 + $0x18] sm:$0xf]
    %v78 = vld [vmem:[#allocation2 + $0x1c] sm:$0xf]
    %v79 = vld [vmem:[#allocation2 + $0x20] sm:$0xf]
    %v80 = vld [vmem:[#allocation2 + $0x24] sm:$0xf]
    %v81 = vld [vmem:[#allocation2 + $0x28] sm:$0xf]
    %v82 = vld [vmem:[#allocation2 + $0x2c] sm:$0xf]
    %v83 = vld [vmem:[#allocation2 + $0x30] sm:$0xf]
    %v84 = vld [vmem:[#allocation2 + $0x34] sm:$0xf]
    %v85 = vld [vmem:[#allocation2 + $0x38] sm:$0xf]
    %v86 = vld [vmem:[#allocation2 + $0x3c] sm:$0xf]
    %v87 = vld [vmem:[#allocation2 + $0x40] sm:$0xf]
    %v88 = vld [vmem:[#allocation2 + $0x44] sm:$0xf]
    %v89 = vld [vmem:[#allocation2 + $0x48] sm:$0xf]
    %v90 = vld [vmem:[#allocation2 + $0x4c] sm:$0xf]
    %v91 = vld [vmem:[#allocation2 + $0x50] sm:$0xf]
    %v92 = vld [vmem:[#allocation2 + $0x54] sm:$0xf]
    %v93 = vld [vmem:[#allocation2 + $0x58] sm:$0xf]
    %v94 = vld [vmem:[#allocation2 + $0x5c] sm:$0xf]
    %v95 = vld [vmem:[#allocation2 + $0x60] sm:$0xf]
    %v96 = vld [vmem:[#allocation2 + $0x64] sm:$0xf]
    %v97 = vld [vmem:[#allocation2 + $0x68] sm:$0xf]
    %v98 = vld [vmem:[#allocation2 + $0x6c] sm:$0xf]
    %v99 = vld [vmem:[#allocation2 + $0x70] sm:$0xf]
    %v100 = vld [vmem:[#allocation2 + $0x74] sm:$0xf]
    %v101 = vld [vmem:[#allocation2 + $0x78] sm:$0xf]
    %v102 = vld [vmem:[#allocation2 + $0x7c] sm:$0xf]
    %v103 = vld [vmem:[#allocation2 + $0x80] sm:$0xf]
    %v104 = vld [vmem:[#allocation2 + $0x84] sm:$0xf]
    %v105 = vld [vmem:[#allocation2 + $0x88] sm:$0xf]
    %v106 = vld [vmem:[#allocation2 + $0x8c] sm:$0xf]
    %v107 = vld [vmem:[#allocation2 + $0x90] sm:$0xf]
    %v108 = vld [vmem:[#allocation2 + $0x94] sm:$0xf]
    %v109 = vld [vmem:[#allocation2 + $0x98] sm:$0xf]
    %v110 = vld [vmem:[#allocation2 + $0x9c] sm:$0xf]
    %v111 = vld [vmem:[#allocation2 + $0xa0] sm:$0xf]
    %v112 = vld [vmem:[#allocation2 + $0xa4] sm:$0xf]
    %v113 = vld [vmem:[#allocation2 + $0xa8] sm:$0xf]
    %v114 = vld [vmem:[#allocation2 + $0xac] sm:$0xf]
    %v115 = vld [vmem:[#allocation2 + $0xb0] sm:$0xf]
    %v116 = vld [vmem:[#allocation2 + $0xb4] sm:$0xf]
    %v117 = vld [vmem:[#allocation2 + $0xb8] sm:$0xf]
    %v118 = vld [vmem:[#allocation2 + $0xbc] sm:$0xf]
    %v119 = vld [vmem:[#allocation2 + $0xc0] sm:$0xf]
    %v120 = vld [vmem:[#allocation2 + $0xc4] sm:$0xf]
    %v121 = vld [vmem:[#allocation2 + $0xc8] sm:$0xf]
    %v122 = vld [vmem:[#allocation2 + $0xcc] sm:$0xf]
    %v123 = vld [vmem:[#allocation2 + $0xd0] sm:$0xf]
    %v124 = vld [vmem:[#allocation2 + $0xd4] sm:$0xf]
    %v125 = vld [vmem:[#allocation2 + $0xd8] sm:$0xf]
    %v126 = vld [vmem:[#allocation2 + $0xdc] sm:$0xf]
    %v127 = vld [vmem:[#allocation2 + $0xe0] sm:$0xf]
    %v128 = vld [vmem:[#allocation2 + $0xe4] sm:$0xf]
    %v129 = vld [vmem:[#allocation2 + $0xe8] sm:$0xf]
    %v130 = vld [vmem:[#allocation2 + $0xec] sm:$0xf]
    %v131 = vld [vmem:[#allocation2 + $0xf0] sm:$0xf]
    %v132 = vld [vmem:[#allocation2 + $0xf4] sm:$0xf]
    %v133 = vld [vmem:[#allocation2 + $0xf8] sm:$0xf]
    %v134 = vld [vmem:[#allocation2 + $0xfc] sm:$0xf]
    %v135 = vld [vmem:[#allocation2 + $0x100] sm:$0xf]
    %v136 = vld [vmem:[#allocation2 + $0x104] sm:$0xf]
    %v137 = vld [vmem:[#allocation2 + $0x108] sm:$0xf]
    %v138 = vld [vmem:[#allocation2 + $0x10c] sm:$0xf]
    %v139 = vld [vmem:[#allocation2 + $0x110] sm:$0xf]
    %v140 = vld [vmem:[#allocation2 + $0x114] sm:$0xf]
    %v141 = vld [vmem:[#allocation2 + $0x118] sm:$0xf]
    %v142 = vld [vmem:[#allocation2 + $0x11c] sm:$0xf]
    %v143 = vld [vmem:[#allocation2 + $0x120] sm:$0xf]
    %v144 = vld [vmem:[#allocation2 + $0x124] sm:$0xf]
    %v145 = vld [vmem:[#allocation2 + $0x128] sm:$0xf]
    %v146 = vld [vmem:[#allocation2 + $0x12c] sm:$0xf]
    %v147 = vld [vmem:[#allocation2 + $0x130] sm:$0xf]
    %v148 = vld [vmem:[#allocation2 + $0x134] sm:$0xf]
    %v149 = vld [vmem:[#allocation2 + $0x138] sm:$0xf]
    %v150 = vld [vmem:[#allocation2 + $0x13c] sm:$0xf]
    %v151 = vld [vmem:[#allocation2 + $0x140] sm:$0xf]
    %v152 = vld [vmem:[#allocation2 + $0x144] sm:$0xf]
    %v153 = vld [vmem:[#allocation2 + $0x148] sm:$0xf]
    %v154 = vld [vmem:[#allocation2 + $0x14c] sm:$0xf]
    %v155 = vld [vmem:[#allocation2 + $0x150] sm:$0xf]
    %v156 = vld [vmem:[#allocation2 + $0x154] sm:$0xf]
    %v157 = vld [vmem:[#allocation2 + $0x158] sm:$0xf]
    %v158 = vld [vmem:[#allocation2 + $0x15c] sm:$0xf]
    %v159 = vld [vmem:[#allocation2 + $0x160] sm:$0xf]
    %v160 = vld [vmem:[#allocation2 + $0x164] sm:$0xf]
    %v161 = vld [vmem:[#allocation2 + $0x168] sm:$0xf]
    %v162 = vld [vmem:[#allocation2 + $0x16c] sm:$0xf]
    %v163 = vld [vmem:[#allocation2 + $0x170] sm:$0xf]
    %v164 = vld [vmem:[#allocation2 + $0x174] sm:$0xf]
    %v165 = vld [vmem:[#allocation2 + $0x178] sm:$0xf]
    %v166 = vld [vmem:[#allocation2 + $0x17c] sm:$0xf]
    %v167 = vld [vmem:[%s2] sm:$0x1]
    %v169 = vlaneseq
    %v170 = vshrl.u32 %v169, 7
    %v171 = vsub.s32 0, %v170
    %v172 = vrot.slane %v167, %v171
    %v270 = vunpack.c.l.b16 %v71
    %v271 = vunpack.c.l.b16 %v72
    %v272 = vunpack.c.l.b16 %v73
    %v273 = vunpack.c.l.b16 %v74
    %v274 = vunpack.c.l.b16 %v75
    %v275 = vunpack.c.l.b16 %v76
    %v276 = vunpack.c.l.b16 %v77
    %v277 = vunpack.c.l.b16 %v78
    %v278 = vunpack.c.l.b16 %v79
    %v279 = vunpack.c.l.b16 %v80
    %v280 = vunpack.c.l.b16 %v81
    %v281 = vunpack.c.l.b16 %v82
    %v282 = vunpack.c.l.b16 %v83
    %v283 = vunpack.c.l.b16 %v84
    %v284 = vunpack.c.l.b16 %v85
    %v285 = vunpack.c.l.b16 %v86
    %v286 = vunpack.c.l.b16 %v87
    %v287 = vunpack.c.l.b16 %v88
    %v288 = vunpack.c.l.b16 %v89
    %v289 = vunpack.c.l.b16 %v90
    %v290 = vunpack.c.l.b16 %v91
    %v291 = vunpack.c.l.b16 %v92
    %v292 = vunpack.c.l.b16 %v93
    %v293 = vunpack.c.l.b16 %v94
    %v294 = vunpack.c.l.b16 %v95
    %v295 = vunpack.c.l.b16 %v96
    %v296 = vunpack.c.l.b16 %v97
    %v297 = vunpack.c.l.b16 %v98
    %v298 = vunpack.c.l.b16 %v99
    %v299 = vunpack.c.l.b16 %v100
    %v300 = vunpack.c.l.b16 %v101
    %v301 = vunpack.c.l.b16 %v102
    %v302 = vunpack.c.l.b16 %v103
    %v303 = vunpack.c.l.b16 %v104
    %v304 = vunpack.c.l.b16 %v105
    %v305 = vunpack.c.l.b16 %v106
    %v306 = vunpack.c.l.b16 %v107
    %v307 = vunpack.c.l.b16 %v108
    %v308 = vunpack.c.l.b16 %v109
    %v309 = vunpack.c.l.b16 %v110
    %v310 = vunpack.c.l.b16 %v111
    %v311 = vunpack.c.l.b16 %v112
    %v312 = vunpack.c.l.b16 %v113
    %v313 = vunpack.c.l.b16 %v114
    %v314 = vunpack.c.l.b16 %v115
    %v315 = vunpack.c.l.b16 %v116
    %v316 = vunpack.c.l.b16 %v117
    %v317 = vunpack.c.l.b16 %v118
    %v318 = vunpack.c.l.b16 %v119
    %v319 = vunpack.c.l.b16 %v120
    %v320 = vunpack.c.l.b16 %v121
    %v321 = vunpack.c.l.b16 %v122
    %v322 = vunpack.c.l.b16 %v123
    %v323 = vunpack.c.l.b16 %v124
    %v324 = vunpack.c.l.b16 %v125
    %v325 = vunpack.c.l.b16 %v126
    %v326 = vunpack.c.l.b16 %v127
    %v327 = vunpack.c.l.b16 %v128
    %v328 = vunpack.c.l.b16 %v129
    %v329 = vunpack.c.l.b16 %v130
    %v330 = vunpack.c.l.b16 %v131
    %v331 = vunpack.c.l.b16 %v132
    %v332 = vunpack.c.l.b16 %v133
    %v333 = vunpack.c.l.b16 %v134
    %v334 = vunpack.c.l.b16 %v135
    %v335 = vunpack.c.l.b16 %v136
    %v336 = vunpack.c.l.b16 %v137
    %v337 = vunpack.c.l.b16 %v138
    %v338 = vunpack.c.l.b16 %v139
    %v339 = vunpack.c.l.b16 %v140
    %v340 = vunpack.c.l.b16 %v141
    %v341 = vunpack.c.l.b16 %v142
    %v342 = vunpack.c.l.b16 %v143
    %v343 = vunpack.c.l.b16 %v144
    %v344 = vunpack.c.l.b16 %v145
    %v345 = vunpack.c.l.b16 %v146
    %v346 = vunpack.c.l.b16 %v147
    %v347 = vunpack.c.l.b16 %v148
    %v348 = vunpack.c.l.b16 %v149
    %v349 = vunpack.c.l.b16 %v150
    %v350 = vunpack.c.l.b16 %v151
    %v351 = vunpack.c.l.b16 %v152
    %v352 = vunpack.c.l.b16 %v153
    %v353 = vunpack.c.l.b16 %v154
    %v354 = vunpack.c.l.b16 %v155
    %v355 = vunpack.c.l.b16 %v156
    %v356 = vunpack.c.l.b16 %v157
    %v357 = vunpack.c.l.b16 %v158
    %v358 = vunpack.c.l.b16 %v159
    %v359 = vunpack.c.l.b16 %v160
    %v360 = vunpack.c.l.b16 %v161
    %v361 = vunpack.c.l.b16 %v162
    %v362 = vunpack.c.l.b16 %v163
    %v363 = vunpack.c.l.b16 %v164
    %v364 = vunpack.c.l.b16 %v165
    %v365 = vunpack.c.l.b16 %v166
    %v366 = vpack.c.b16 %v271, %v270
    %v367 = vpack.c.b16 %v273, %v272
    %v368 = vpack.c.b16 %v275, %v274
    %v369 = vpack.c.b16 %v277, %v276
    %v370 = vpack.c.b16 %v279, %v278
    %v371 = vpack.c.b16 %v281, %v280
    %v372 = vpack.c.b16 %v283, %v282
    %v373 = vpack.c.b16 %v285, %v284
    %v374 = vpack.c.b16 %v287, %v286
    %v375 = vpack.c.b16 %v289, %v288
    %v376 = vpack.c.b16 %v291, %v290
    %v377 = vpack.c.b16 %v293, %v292
    %v378 = vpack.c.b16 %v295, %v294
    %v379 = vpack.c.b16 %v297, %v296
    %v380 = vpack.c.b16 %v299, %v298
    %v381 = vpack.c.b16 %v301, %v300
    %v382 = vpack.c.b16 %v303, %v302
    %v383 = vpack.c.b16 %v305, %v304
    %v384 = vpack.c.b16 %v307, %v306
    %v385 = vpack.c.b16 %v309, %v308
    %v386 = vpack.c.b16 %v311, %v310
    %v387 = vpack.c.b16 %v313, %v312
    %v388 = vpack.c.b16 %v315, %v314
    %v389 = vpack.c.b16 %v317, %v316
    %v390 = vpack.c.b16 %v319, %v318
    %v391 = vpack.c.b16 %v321, %v320
    %v392 = vpack.c.b16 %v323, %v322
    %v393 = vpack.c.b16 %v325, %v324
    %v394 = vpack.c.b16 %v327, %v326
    %v395 = vpack.c.b16 %v329, %v328
    %v396 = vpack.c.b16 %v331, %v330
    %v397 = vpack.c.b16 %v333, %v332
    %v398 = vpack.c.b16 %v335, %v334
    %v399 = vpack.c.b16 %v337, %v336
    %v400 = vpack.c.b16 %v339, %v338
    %v401 = vpack.c.b16 %v341, %v340
    %v402 = vpack.c.b16 %v343, %v342
    %v403 = vpack.c.b16 %v345, %v344
    %v404 = vpack.c.b16 %v347, %v346
    %v405 = vpack.c.b16 %v349, %v348
    %v406 = vpack.c.b16 %v351, %v350
    %v407 = vpack.c.b16 %v353, %v352
    %v408 = vpack.c.b16 %v355, %v354
    %v409 = vpack.c.b16 %v357, %v356
    %v410 = vpack.c.b16 %v359, %v358
    %v411 = vpack.c.b16 %v361, %v360
    %v412 = vpack.c.b16 %v363, %v362
    %v413 = vpack.c.b16 %v365, %v364
    %462 = vmatprep.subr.bf16.mxu0 0
    %463 = vmatpush1.bf16.msra.mxu0 %v366
    %464 = vmatprep.subr.bf16.mxu0 0
    %465 = vmatpush1.bf16.msra.mxu0 %v367
    %466 = vmatprep.subr.bf16.mxu0 0
    %467 = vmatpush1.bf16.msra.mxu0 %v368
    %468 = vmatprep.subr.bf16.mxu0 0
    %469 = vmatpush1.bf16.msra.mxu0 %v369
    %470 = vmatprep.subr.bf16.mxu0 0
    %471 = vmatpush1.bf16.msra.mxu0 %v370
    %472 = vmatprep.subr.bf16.mxu0 0
    %473 = vmatpush1.bf16.msra.mxu0 %v371
    %474 = vmatprep.subr.bf16.mxu0 0
    %475 = vmatpush1.bf16.msra.mxu0 %v372
    %476 = vmatprep.subr.bf16.mxu0 0
    %477 = vmatpush1.bf16.msra.mxu0 %v373
    %478 = vmatprep.subr.bf16.mxu0 0
    %479 = vmatpush1.bf16.msra.mxu0 %v374
    %480 = vmatprep.subr.bf16.mxu0 0
    %481 = vmatpush1.bf16.msra.mxu0 %v375
    %482 = vmatprep.subr.bf16.mxu0 0
    %483 = vmatpush1.bf16.msra.mxu0 %v376
    %484 = vmatprep.subr.bf16.mxu0 0
    %485 = vmatpush1.bf16.msra.mxu0 %v377
    %486 = vmatprep.subr.bf16.mxu0 0
    %487 = vmatpush1.bf16.msra.mxu0 %v378
    %488 = vmatprep.subr.bf16.mxu0 0
    %489 = vmatpush1.bf16.msra.mxu0 %v379
    %490 = vmatprep.subr.bf16.mxu0 0
    %491 = vmatpush1.bf16.msra.mxu0 %v380
    %492 = vmatprep.subr.bf16.mxu0 0
    %493 = vmatpush1.bf16.msra.mxu0 %v381
    %494 = vmatprep.mubr.bf16.mxu0 %v66
    %495 = vmatmul.mubr.bf16.gmra.mrb[0].mxu0 %v65
    %v496 = vpop.f32.mrb[0].mxu0
    %v497 = vadd.f32 %v172, %v496
    %v498 = vpop.f32.mrb[0].mxu0
    %v499 = vpop.f32.mrb[0].mxu0
    %v500 = vpop.f32.mrb[0].mxu0
    %501 = vdwg.mxu0
    %502 = vmatprep.subr.bf16.mxu0 0
    %503 = vmatpush1.bf16.msra.mxu0 %v382
    %504 = vmatprep.subr.bf16.mxu0 0
    %505 = vmatpush1.bf16.msra.mxu0 %v383
    %506 = vmatprep.subr.bf16.mxu0 0
    %507 = vmatpush1.bf16.msra.mxu0 %v384
    %508 = vmatprep.subr.bf16.mxu0 0
    %509 = vmatpush1.bf16.msra.mxu0 %v385
    %510 = vmatprep.subr.bf16.mxu0 0
    %511 = vmatpush1.bf16.msra.mxu0 %v386
    %512 = vmatprep.subr.bf16.mxu0 0
    %513 = vmatpush1.bf16.msra.mxu0 %v387
    %514 = vmatprep.subr.bf16.mxu0 0
    %515 = vmatpush1.bf16.msra.mxu0 %v388
    %516 = vmatprep.subr.bf16.mxu0 0
    %517 = vmatpush1.bf16.msra.mxu0 %v389
    %518 = vmatprep.subr.bf16.mxu0 0
    %519 = vmatpush1.bf16.msra.mxu0 %v390
    %520 = vmatprep.subr.bf16.mxu0 0
    %521 = vmatpush1.bf16.msra.mxu0 %v391
    %522 = vmatprep.subr.bf16.mxu0 0
    %523 = vmatpush1.bf16.msra.mxu0 %v392
    %524 = vmatprep.subr.bf16.mxu0 0
    %525 = vmatpush1.bf16.msra.mxu0 %v393
    %526 = vmatprep.subr.bf16.mxu0 0
    %527 = vmatpush1.bf16.msra.mxu0 %v394
    %528 = vmatprep.subr.bf16.mxu0 0
    %529 = vmatpush1.bf16.msra.mxu0 %v395
    %530 = vmatprep.subr.bf16.mxu0 0
    %531 = vmatpush1.bf16.msra.mxu0 %v396
    %532 = vmatprep.subr.bf16.mxu0 0
    %533 = vmatpush1.bf16.msra.mxu0 %v397
    %534 = vmatprep.mubr.bf16.mxu0 %v68
    %535 = vmatmul.mubr.bf16.gmra.mrb[0].mxu0 %v67
    %v536 = vpop.f32.mrb[0].mxu0
    %v537 = vadd.f32 %v497, %v536
    %v538 = vpop.f32.mrb[0].mxu0
    %v539 = vpop.f32.mrb[0].mxu0
    %v540 = vpop.f32.mrb[0].mxu0
    %541 = vdwg.mxu0
    %542 = vmatprep.subr.bf16.mxu0 0
    %543 = vmatpush1.bf16.msra.mxu0 %v398
    %544 = vmatprep.subr.bf16.mxu0 0
    %545 = vmatpush1.bf16.msra.mxu0 %v399
    %546 = vmatprep.subr.bf16.mxu0 0
    %547 = vmatpush1.bf16.msra.mxu0 %v400
    %548 = vmatprep.subr.bf16.mxu0 0
    %549 = vmatpush1.bf16.msra.mxu0 %v401
    %550 = vmatprep.subr.bf16.mxu0 0
    %551 = vmatpush1.bf16.msra.mxu0 %v402
    %552 = vmatprep.subr.bf16.mxu0 0
    %553 = vmatpush1.bf16.msra.mxu0 %v403
    %554 = vmatprep.subr.bf16.mxu0 0
    %555 = vmatpush1.bf16.msra.mxu0 %v404
    %556 = vmatprep.subr.bf16.mxu0 0
    %557 = vmatpush1.bf16.msra.mxu0 %v405
    %558 = vmatprep.subr.bf16.mxu0 0
    %559 = vmatpush1.bf16.msra.mxu0 %v406
    %560 = vmatprep.subr.bf16.mxu0 0
    %561 = vmatpush1.bf16.msra.mxu0 %v407
    %562 = vmatprep.subr.bf16.mxu0 0
    %563 = vmatpush1.bf16.msra.mxu0 %v408
    %564 = vmatprep.subr.bf16.mxu0 0
    %565 = vmatpush1.bf16.msra.mxu0 %v409
    %566 = vmatprep.subr.bf16.mxu0 0
    %567 = vmatpush1.bf16.msra.mxu0 %v410
    %568 = vmatprep.subr.bf16.mxu0 0
    %569 = vmatpush1.bf16.msra.mxu0 %v411
    %570 = vmatprep.subr.bf16.mxu0 0
    %571 = vmatpush1.bf16.msra.mxu0 %v412
    %572 = vmatprep.subr.bf16.mxu0 0
    %573 = vmatpush1.bf16.msra.mxu0 %v413
    %574 = vmatprep.mubr.bf16.mxu0 %v70
    %575 = vmatmul.mubr.bf16.gmra.mrb[0].mxu0 %v69
    %v576 = vpop.f32.mrb[0].mxu0
    %v577 = vadd.f32 %v537, %v576
    %v578 = vpop.f32.mrb[0].mxu0
    %v579 = vpop.f32.mrb[0].mxu0
    %v580 = vpop.f32.mrb[0].mxu0
    %581 = vdwg.mxu0
    %vm582 = vcmask 1041408
    %v583 = vsel %vm582, %v577, -inf
    %584 = vmax.xlane.f32.xlu0 %v583
    %v585 = vpop.xlane.xlu0 %584
    %v586 = vsub.f32 %v577, %v585
    %v587 = vmul.f32 %v586, 1.442695
    %v588 = vpow.pop %v587
    %v589 = vsel %vm582, %v588, 0.0
    %590 = vadd.xlane.f32.xlu0 %v589
    %v591 = vpop.xlane.xlu0 %590
    %v592 = vrcp.pop %v591
    %v593 = vmul.f32 %v588, %v592
    %594 = vst [vmem:[#allocation5] sm:$0x3] %v593
    // Predicated region
    $region18: #{bert_classifier_head.1} parent=1 // pred_check
      _
    $region19: #{bert_classifier_head.1} parent=1 // pred_check_branch
      %596 = sbr.rel (0) target = $region21
    $region20: #{bert_classifier_head.1} parent=1 // pred_region
      %s598 = ssub.s32 32, 32
      %599 = vsyncadd [#allocation4], %s598
      %s601 = sshll.u32 [#allocation5], 4
      %s602 = int_to_ptr.vmem [resolvable:$true] %s601
      %604 = dma.vmem_to_hbm [thread:$0]  %s602, 32, %s3, [#allocation4]
    $region21: #{bert_classifier_head.1} parent=1 // pred_fallthru
      _
    // Predicated region
    $region22: #{bert_classifier_head.1} parent=1 // pred_check
      _
    $region23: #{bert_classifier_head.1} parent=1 // pred_check_branch
      %606 = sbr.rel (0) target = $region25
    $region24: #{bert_classifier_head.1} parent=1 // pred_region
      %607 = dma.done [#allocation4], 32
    $region25: #{bert_classifier_head.1} parent=1 // pred_fallthru
      _
    %608 = vsyncpa [#allocation3], 1
    %609 = vsyncpa [#allocation4], 1

</llo_original>
